<compile_context>
chip_gen: v5e
topology: v5e:2x2
jax: 0.10.0
libtpu: 0.0.40
codegen_flags: <defaults>
</compile_context>

<pallas_src>
import jax
import jax.numpy as jnp
from jax.experimental import pallas as pl
from jax.experimental.pallas import tpu as pltpu

BN_EPS = 1e-5
LANES = 128
# MXU operand dtype. f32 keeps exact parity with the float32 PyTorch module and avoids
# hidden f32<->bf16 conversion passes on v5e (no bf16 VPU). On v6e/v7x flip this to
# jnp.bfloat16 for higher MXU throughput at scale (accumulation stays f32 either way).
MXU_DTYPE = jnp.float32


def _pad_to(n, m=LANES):
    return ((n + m - 1) // m) * m


def _pad_cols(x, cols):
    return jnp.zeros((x.shape[0], cols), x.dtype).at[:, : x.shape[1]].set(x)


def _vmem_spec():
    return pl.BlockSpec(memory_space=pltpu.MemorySpace.VMEM)


def _smem_spec():
    return pl.BlockSpec(memory_space=pltpu.MemorySpace.SMEM)


def _bn_relu(z, gamma, beta, inv_rows):
    # Training-mode BatchNorm (biased batch variance, matches nn.BatchNorm1d.train()
    # at init) + ReLU.  One pass over z: sums -> folded scale -> z*scale + shift.
    s1 = jnp.sum(z, axis=0, keepdims=True)
    s2 = jnp.sum(z * z, axis=0, keepdims=True)
    mu = s1 * inv_rows
    var = jnp.maximum(s2 * inv_rows - mu * mu, 0.0)
    scale = gamma * jax.lax.rsqrt(var + BN_EPS)
    shift = beta - mu * scale
    return jnp.maximum(z * scale + shift, 0.0)


# ---------------------------------------------------------------------------
# Fused forward kernel
# ---------------------------------------------------------------------------
def _make_fused_kernel(num_layer, n_nodes, n_edges):
    inv_rows = 1.0 / float(n_nodes)

    def kernel(*refs):
        (eps_ref, cat_ref, nf_ref, ef_ref,
         wn_ref, bn_ref, we_ref, be_ref) = refs[:8]
        layer_refs = refs[8:8 + 8 * num_layer]
        wp_ref, bp_ref, o_ref, feat_ref = refs[8 + 8 * num_layer:]

        def mm(a, b):
            return jnp.dot(a.astype(MXU_DTYPE), b.astype(MXU_DTYPE),
                           preferred_element_type=jnp.float32)

        # --- node / edge encoders (Linear) ---------------------------------
        hv = mm(nf_ref[...], wn_ref[...]) + bn_ref[...]
        he = mm(ef_ref[...], we_ref[...]) + be_ref[...]

        # Edge rows of the stacked feature buffer are layer-invariant: write once.
        feat_ref[n_nodes:n_nodes + n_edges, :] = he
        cat = cat_ref[...]            # (N, N+E) = [A_norm | B_norm], loaded once

        # --- GINConv layers -------------------------------------------------
        for l in range(num_layer):
            (w1, b1, g1, bt1, w2, b2, g2, bt2) = layer_refs[8 * l: 8 * l + 8]
            # mean(u_add_e) aggregation as a single matmul against [hv ; he].
            feat_ref[0:n_nodes, :] = hv
            agg = mm(cat, feat_ref[...])
            h = (1.0 + eps_ref[l]) * hv + agg
            # MLP: Linear -> BN -> ReLU -> Linear -> BN -> ReLU
            z1 = mm(h, w1[...]) + b1[...]
            h1 = _bn_relu(z1, g1[...], bt1[...], inv_rows)
            z2 = mm(h1, w2[...]) + b2[...]
            hv = _bn_relu(z2, g2[...], bt2[...], inv_rows)

        # --- prediction head ------------------------------------------------
        o_ref[...] = mm(hv, wp_ref[...]) + bp_ref[...]

    return kernel


def gin_forward(params, cat, node_feats, edge_feats, num_task):
    n_nodes = node_feats.shape[0]
    n_edges = edge_feats.shape[0]
    num_layer = len(params["layers"])

    in_pad = params["wn"].shape[0]
    emb_pad = params["wn"].shape[1]
    task_pad = params["wp"].shape[1]

    nf_p = _pad_cols(node_feats, in_pad)
    ef_p = _pad_cols(edge_feats, in_pad)
    eps_all = jnp.concatenate([p["eps"] for p in params["layers"]])  # (num_layer,)

    flat = [eps_all, cat, nf_p, ef_p,
            params["wn"], params["bn"], params["we"], params["be"]]
    for p in params["layers"]:
        flat += [p["w1"], p["b1"], p["g1"], p["bt1"],
                 p["w2"], p["b2"], p["g2"], p["bt2"]]
    flat += [params["wp"], params["bp"]]

    out_pad = pl.pallas_call(
        _make_fused_kernel(num_layer, n_nodes, n_edges),
        out_shape=jax.ShapeDtypeStruct((n_nodes, task_pad), jnp.float32),
        in_specs=[_smem_spec()] + [_vmem_spec()] * (len(flat) - 1),
        out_specs=_vmem_spec(),
        scratch_shapes=[pltpu.VMEM((n_nodes + n_edges, emb_pad), jnp.float32)],
    )(*flat)
    return out_pad[:, :num_task]


# ---------------------------------------------------------------------------
# Parameter init (deterministic, synthetic — shapes follow GIN.__init__ defaults;
# all weight/bias tensors are zero-padded to 128-lane channel dims so the padded
# channels stay exactly zero through the whole network).
# ---------------------------------------------------------------------------
def init_params(key, in_dim, emb_dim, num_layer, num_task):
    in_p = _pad_to(in_dim)
    emb_p = _pad_to(emb_dim)
    hid = 2 * emb_dim
    hid_p = _pad_to(hid)
    task_p = _pad_to(num_task)

    def lin(k, fan_in, fan_out, rows_p, cols_p, scale=0.1):
        kw, kb = jax.random.split(k)
        w = scale * jax.random.normal(kw, (fan_in, fan_out), jnp.float32)
        b = scale * jax.random.normal(kb, (fan_out,), jnp.float32)
        w_p = jnp.zeros((rows_p, cols_p), jnp.float32).at[:fan_in, :fan_out].set(w)
        b_p = jnp.zeros((1, cols_p), jnp.float32).at[0, :fan_out].set(b)
        return w_p, b_p

    keys = jax.random.split(key, 3 + num_layer)
    params = {}
    params["wn"], params["bn"] = lin(keys[0], in_dim, emb_dim, in_p, emb_p)
    params["we"], params["be"] = lin(keys[1], in_dim, emb_dim, in_p, emb_p)
    params["wp"], params["bp"] = lin(keys[2], emb_dim, num_task, emb_p, task_p)

    layers = []
    for l in range(num_layer):
        kl = jax.random.split(keys[3 + l], 2)
        w1, b1 = lin(kl[0], emb_dim, hid, emb_p, hid_p)
        w2, b2 = lin(kl[1], hid, emb_dim, hid_p, emb_p)
        layers.append(dict(
            eps=jnp.zeros((1,), jnp.float32),      # nn.Parameter(torch.Tensor([0]))
            w1=w1, b1=b1,
            g1=jnp.ones((1, hid_p), jnp.float32), bt1=jnp.zeros((1, hid_p), jnp.float32),
            w2=w2, b2=b2,
            g2=jnp.ones((1, emb_p), jnp.float32), bt2=jnp.zeros((1, emb_p), jnp.float32),
        ))
    params["layers"] = layers
    return params


def build_graph_cat(src, dst, n_nodes):
    """Dense [A_norm | B_norm] (N, N+E): A_norm[v,u]=#edges(u->v)/deg(v),
    B_norm[v,e]=[dst(e)==v]/deg(v); zero rows for isolated nodes (DGL mean -> 0)."""
    onehot_dst = (dst[:, None] == jnp.arange(n_nodes)[None, :]).astype(jnp.float32)  # (E, N)
    onehot_src = (src[:, None] == jnp.arange(n_nodes)[None, :]).astype(jnp.float32)  # (E, N)
    deg = jnp.sum(onehot_dst, axis=0)                                                # (N,)
    inv_deg = jnp.where(deg > 0, 1.0 / jnp.maximum(deg, 1.0), 0.0)
    b_norm = onehot_dst.T * inv_deg[:, None]          # (N, E)
    a_norm = b_norm @ onehot_src                      # (N, N)
    return jnp.concatenate([a_norm, b_norm], axis=1)  # (N, N+E)


if __name__ == "__main__":
    IN_DIM, EMB_DIM, NUM_LAYER, NUM_TASK = 8, 50, 2, 112
    N_NODES, N_EDGES = 16, 32

    key = jax.random.PRNGKey(0)
    k_graph, k_nfeat, k_efeat, k_param = jax.random.split(key, 4)

    ks, kd = jax.random.split(k_graph)
    src = jax.random.randint(ks, (N_EDGES,), 0, N_NODES)
    dst = jax.random.randint(kd, (N_EDGES,), 0, N_NODES)
    cat = build_graph_cat(src, dst, N_NODES)

    node_feats = jax.random.normal(k_nfeat, (N_NODES, IN_DIM), jnp.float32)
    edge_feats = jax.random.normal(k_efeat, (N_EDGES, IN_DIM), jnp.float32)

    params = init_params(k_param, IN_DIM, EMB_DIM, NUM_LAYER, NUM_TASK)

    out = gin_forward(params, cat, node_feats, edge_feats, NUM_TASK)
    out = jax.block_until_ready(out)
    assert out.shape == (N_NODES, NUM_TASK) and out.dtype == jnp.float32
    print("KERNEL_OK")
</pallas_src>

<mosaic_0001>
module attributes {stable_mosaic.version = 11 : i64} {
  func.func @kernel(%arg0: memref<2xf32, #tpu.memory_space<smem>>, %arg1: memref<16x48xf32, #tpu.memory_space<vmem>>, %arg2: memref<16x128xf32, #tpu.memory_space<vmem>>, %arg3: memref<32x128xf32, #tpu.memory_space<vmem>>, %arg4: memref<128x128xf32, #tpu.memory_space<vmem>>, %arg5: memref<1x128xf32, #tpu.memory_space<vmem>>, %arg6: memref<128x128xf32, #tpu.memory_space<vmem>>, %arg7: memref<1x128xf32, #tpu.memory_space<vmem>>, %arg8: memref<128x128xf32, #tpu.memory_space<vmem>>, %arg9: memref<1x128xf32, #tpu.memory_space<vmem>>, %arg10: memref<1x128xf32, #tpu.memory_space<vmem>>, %arg11: memref<1x128xf32, #tpu.memory_space<vmem>>, %arg12: memref<128x128xf32, #tpu.memory_space<vmem>>, %arg13: memref<1x128xf32, #tpu.memory_space<vmem>>, %arg14: memref<1x128xf32, #tpu.memory_space<vmem>>, %arg15: memref<1x128xf32, #tpu.memory_space<vmem>>, %arg16: memref<128x128xf32, #tpu.memory_space<vmem>>, %arg17: memref<1x128xf32, #tpu.memory_space<vmem>>, %arg18: memref<1x128xf32, #tpu.memory_space<vmem>>, %arg19: memref<1x128xf32, #tpu.memory_space<vmem>>, %arg20: memref<128x128xf32, #tpu.memory_space<vmem>>, %arg21: memref<1x128xf32, #tpu.memory_space<vmem>>, %arg22: memref<1x128xf32, #tpu.memory_space<vmem>>, %arg23: memref<1x128xf32, #tpu.memory_space<vmem>>, %arg24: memref<128x128xf32, #tpu.memory_space<vmem>>, %arg25: memref<1x128xf32, #tpu.memory_space<vmem>>, %arg26: memref<16x128xf32, #tpu.memory_space<vmem>>, %arg27: memref<48x128xf32, #tpu.memory_space<vmem>>) attributes {dimension_semantics = [], scalar_prefetch = 0 : i64, scratch_operands = 1 : i64, tpu.core_type = #tpu.core_type<tc>} {
    %c0 = arith.constant 0 : index
    %c0_0 = arith.constant 0 : index
    %0 = vector.load %arg2[%c0, %c0_0] : memref<16x128xf32, #tpu.memory_space<vmem>>, vector<16x128xf32>
    %c0_1 = arith.constant 0 : index
    %c0_2 = arith.constant 0 : index
    %1 = vector.load %arg4[%c0_1, %c0_2] : memref<128x128xf32, #tpu.memory_space<vmem>>, vector<128x128xf32>
    %cst = arith.constant dense<0.000000e+00> : vector<16x128xf32>
    %2 = tpu.matmul %0, %1, %cst {dimension_numbers = #tpu.dot_dimension_numbers<[1], [0], [0], [1], [0, 0, 1, 1], [], []>} : vector<16x128xf32>, vector<128x128xf32>, vector<16x128xf32> -> vector<16x128xf32>
    %c0_3 = arith.constant 0 : index
    %c0_4 = arith.constant 0 : index
    %3 = vector.load %arg5[%c0_3, %c0_4] : memref<1x128xf32, #tpu.memory_space<vmem>>, vector<1x128xf32>
    %4 = vector.broadcast %3 : vector<1x128xf32> to vector<16x128xf32>
    %5 = arith.addf %2, %4 : vector<16x128xf32>
    %c0_5 = arith.constant 0 : index
    %c0_6 = arith.constant 0 : index
    %6 = vector.load %arg3[%c0_5, %c0_6] : memref<32x128xf32, #tpu.memory_space<vmem>>, vector<32x128xf32>
    %c0_7 = arith.constant 0 : index
    %c0_8 = arith.constant 0 : index
    %7 = vector.load %arg6[%c0_7, %c0_8] : memref<128x128xf32, #tpu.memory_space<vmem>>, vector<128x128xf32>
    %cst_9 = arith.constant dense<0.000000e+00> : vector<32x128xf32>
    %8 = tpu.matmul %6, %7, %cst_9 {dimension_numbers = #tpu.dot_dimension_numbers<[1], [0], [0], [1], [0, 0, 1, 1], [], []>} : vector<32x128xf32>, vector<128x128xf32>, vector<32x128xf32> -> vector<32x128xf32>
    %c0_10 = arith.constant 0 : index
    %c0_11 = arith.constant 0 : index
    %9 = vector.load %arg7[%c0_10, %c0_11] : memref<1x128xf32, #tpu.memory_space<vmem>>, vector<1x128xf32>
    %10 = vector.broadcast %9 : vector<1x128xf32> to vector<32x128xf32>
    %11 = arith.addf %8, %10 : vector<32x128xf32>
    %c16 = arith.constant 16 : index
    %c0_12 = arith.constant 0 : index
    %12 = vector.load %arg27[%c16, %c0_12] : memref<48x128xf32, #tpu.memory_space<vmem>>, vector<32x128xf32>
    tpu.vector_store %arg27[%c16, %c0_12], %11 {strides = array<i32>} : memref<48x128xf32, #tpu.memory_space<vmem>>, vector<32x128xf32>,
    %c0_13 = arith.constant 0 : index
    %c0_14 = arith.constant 0 : index
    %13 = vector.load %arg1[%c0_13, %c0_14] : memref<16x48xf32, #tpu.memory_space<vmem>>, vector<16x48xf32>
    %c0_15 = arith.constant 0 : index
    %c0_16 = arith.constant 0 : index
    %14 = vector.load %arg27[%c0_15, %c0_16] : memref<48x128xf32, #tpu.memory_space<vmem>>, vector<16x128xf32>
    tpu.vector_store %arg27[%c0_15, %c0_16], %5 {strides = array<i32>} : memref<48x128xf32, #tpu.memory_space<vmem>>, vector<16x128xf32>,
    %c0_17 = arith.constant 0 : index
    %c0_18 = arith.constant 0 : index
    %15 = vector.load %arg27[%c0_17, %c0_18] : memref<48x128xf32, #tpu.memory_space<vmem>>, vector<48x128xf32>
    %cst_19 = arith.constant dense<0.000000e+00> : vector<16x128xf32>
    %16 = tpu.matmul %13, %15, %cst_19 {dimension_numbers = #tpu.dot_dimension_numbers<[1], [0], [0], [1], [0, 0, 1, 1], [], []>} : vector<16x48xf32>, vector<48x128xf32>, vector<16x128xf32> -> vector<16x128xf32>
    %c0_20 = arith.constant 0 : index
    %17 = memref.load %arg0[%c0_20] : memref<2xf32, #tpu.memory_space<smem>>
    %cst_21 = arith.constant 1.000000e+00 : f32
    %18 = arith.addf %cst_21, %17 : f32
    %19 = vector.broadcast %18 : f32 to vector<16x128xf32>
    %20 = arith.mulf %19, %5 : vector<16x128xf32>
    %21 = arith.addf %20, %16 : vector<16x128xf32>
    %c0_22 = arith.constant 0 : index
    %c0_23 = arith.constant 0 : index
    %22 = vector.load %arg8[%c0_22, %c0_23] : memref<128x128xf32, #tpu.memory_space<vmem>>, vector<128x128xf32>
    %cst_24 = arith.constant dense<0.000000e+00> : vector<16x128xf32>
    %23 = tpu.matmul %21, %22, %cst_24 {dimension_numbers = #tpu.dot_dimension_numbers<[1], [0], [0], [1], [0, 0, 1, 1], [], []>} : vector<16x128xf32>, vector<128x128xf32>, vector<16x128xf32> -> vector<16x128xf32>
    %c0_25 = arith.constant 0 : index
    %c0_26 = arith.constant 0 : index
    %24 = vector.load %arg9[%c0_25, %c0_26] : memref<1x128xf32, #tpu.memory_space<vmem>>, vector<1x128xf32>
    %25 = vector.broadcast %24 : vector<1x128xf32> to vector<16x128xf32>
    %26 = arith.addf %23, %25 : vector<16x128xf32>
    %c0_27 = arith.constant 0 : index
    %c0_28 = arith.constant 0 : index
    %27 = vector.load %arg10[%c0_27, %c0_28] : memref<1x128xf32, #tpu.memory_space<vmem>>, vector<1x128xf32>
    %c0_29 = arith.constant 0 : index
    %c0_30 = arith.constant 0 : index
    %28 = vector.load %arg11[%c0_29, %c0_30] : memref<1x128xf32, #tpu.memory_space<vmem>>, vector<1x128xf32>
    %cst_31 = arith.constant dense<0.000000e+00> : vector<128xf32>
    %29 = vector.multi_reduction <add>, %26, %cst_31 [0] : vector<16x128xf32> to vector<128xf32>
    %30 = vector.shape_cast %29 : vector<128xf32> to vector<1x128xf32>
    %31 = arith.mulf %26, %26 : vector<16x128xf32>
    %cst_32 = arith.constant dense<0.000000e+00> : vector<128xf32>
    %32 = vector.multi_reduction <add>, %31, %cst_32 [0] : vector<16x128xf32> to vector<128xf32>
    %33 = vector.shape_cast %32 : vector<128xf32> to vector<1x128xf32>
    %cst_33 = arith.constant 6.250000e-02 : f32
    %34 = vector.broadcast %cst_33 : f32 to vector<1x128xf32>
    %35 = arith.mulf %30, %34 : vector<1x128xf32>
    %cst_34 = arith.constant 6.250000e-02 : f32
    %36 = vector.broadcast %cst_34 : f32 to vector<1x128xf32>
    %37 = arith.mulf %33, %36 : vector<1x128xf32>
    %38 = arith.mulf %35, %35 : vector<1x128xf32>
    %39 = arith.subf %37, %38 : vector<1x128xf32>
    %cst_35 = arith.constant 0.000000e+00 : f32
    %40 = vector.broadcast %cst_35 : f32 to vector<1x128xf32>
    %41 = arith.maximumf %39, %40 : vector<1x128xf32>
    %cst_36 = arith.constant 9.99999974E-6 : f32
    %42 = vector.broadcast %cst_36 : f32 to vector<1x128xf32>
    %43 = arith.addf %41, %42 : vector<1x128xf32>
    %44 = math.rsqrt %43 : vector<1x128xf32>
    %45 = arith.mulf %27, %44 : vector<1x128xf32>
    %46 = arith.mulf %35, %45 : vector<1x128xf32>
    %47 = arith.subf %28, %46 : vector<1x128xf32>
    %48 = vector.broadcast %45 : vector<1x128xf32> to vector<16x128xf32>
    %49 = arith.mulf %26, %48 : vector<16x128xf32>
    %50 = vector.broadcast %47 : vector<1x128xf32> to vector<16x128xf32>
    %51 = arith.addf %49, %50 : vector<16x128xf32>
    %cst_37 = arith.constant 0.000000e+00 : f32
    %52 = vector.broadcast %cst_37 : f32 to vector<16x128xf32>
    %53 = arith.maximumf %51, %52 : vector<16x128xf32>
    %c0_38 = arith.constant 0 : index
    %c0_39 = arith.constant 0 : index
    %54 = vector.load %arg12[%c0_38, %c0_39] : memref<128x128xf32, #tpu.memory_space<vmem>>, vector<128x128xf32>
    %cst_40 = arith.constant dense<0.000000e+00> : vector<16x128xf32>
    %55 = tpu.matmul %53, %54, %cst_40 {dimension_numbers = #tpu.dot_dimension_numbers<[1], [0], [0], [1], [0, 0, 1, 1], [], []>} : vector<16x128xf32>, vector<128x128xf32>, vector<16x128xf32> -> vector<16x128xf32>
    %c0_41 = arith.constant 0 : index
    %c0_42 = arith.constant 0 : index
    %56 = vector.load %arg13[%c0_41, %c0_42] : memref<1x128xf32, #tpu.memory_space<vmem>>, vector<1x128xf32>
    %57 = vector.broadcast %56 : vector<1x128xf32> to vector<16x128xf32>
    %58 = arith.addf %55, %57 : vector<16x128xf32>
    %c0_43 = arith.constant 0 : index
    %c0_44 = arith.constant 0 : index
    %59 = vector.load %arg14[%c0_43, %c0_44] : memref<1x128xf32, #tpu.memory_space<vmem>>, vector<1x128xf32>
    %c0_45 = arith.constant 0 : index
    %c0_46 = arith.constant 0 : index
    %60 = vector.load %arg15[%c0_45, %c0_46] : memref<1x128xf32, #tpu.memory_space<vmem>>, vector<1x128xf32>
    %cst_47 = arith.constant dense<0.000000e+00> : vector<128xf32>
    %61 = vector.multi_reduction <add>, %58, %cst_47 [0] : vector<16x128xf32> to vector<128xf32>
    %62 = vector.shape_cast %61 : vector<128xf32> to vector<1x128xf32>
    %63 = arith.mulf %58, %58 : vector<16x128xf32>
    %cst_48 = arith.constant dense<0.000000e+00> : vector<128xf32>
    %64 = vector.multi_reduction <add>, %63, %cst_48 [0] : vector<16x128xf32> to vector<128xf32>
    %65 = vector.shape_cast %64 : vector<128xf32> to vector<1x128xf32>
    %cst_49 = arith.constant 6.250000e-02 : f32
    %66 = vector.broadcast %cst_49 : f32 to vector<1x128xf32>
    %67 = arith.mulf %62, %66 : vector<1x128xf32>
    %cst_50 = arith.constant 6.250000e-02 : f32
    %68 = vector.broadcast %cst_50 : f32 to vector<1x128xf32>
    %69 = arith.mulf %65, %68 : vector<1x128xf32>
    %70 = arith.mulf %67, %67 : vector<1x128xf32>
    %71 = arith.subf %69, %70 : vector<1x128xf32>
    %cst_51 = arith.constant 0.000000e+00 : f32
    %72 = vector.broadcast %cst_51 : f32 to vector<1x128xf32>
    %73 = arith.maximumf %71, %72 : vector<1x128xf32>
    %cst_52 = arith.constant 9.99999974E-6 : f32
    %74 = vector.broadcast %cst_52 : f32 to vector<1x128xf32>
    %75 = arith.addf %73, %74 : vector<1x128xf32>
    %76 = math.rsqrt %75 : vector<1x128xf32>
    %77 = arith.mulf %59, %76 : vector<1x128xf32>
    %78 = arith.mulf %67, %77 : vector<1x128xf32>
    %79 = arith.subf %60, %78 : vector<1x128xf32>
    %80 = vector.broadcast %77 : vector<1x128xf32> to vector<16x128xf32>
    %81 = arith.mulf %58, %80 : vector<16x128xf32>
    %82 = vector.broadcast %79 : vector<1x128xf32> to vector<16x128xf32>
    %83 = arith.addf %81, %82 : vector<16x128xf32>
    %cst_53 = arith.constant 0.000000e+00 : f32
    %84 = vector.broadcast %cst_53 : f32 to vector<16x128xf32>
    %85 = arith.maximumf %83, %84 : vector<16x128xf32>
    %c0_54 = arith.constant 0 : index
    %c0_55 = arith.constant 0 : index
    %86 = vector.load %arg27[%c0_54, %c0_55] : memref<48x128xf32, #tpu.memory_space<vmem>>, vector<16x128xf32>
    tpu.vector_store %arg27[%c0_54, %c0_55], %85 {strides = array<i32>} : memref<48x128xf32, #tpu.memory_space<vmem>>, vector<16x128xf32>,
    %c0_56 = arith.constant 0 : index
    %c0_57 = arith.constant 0 : index
    %87 = vector.load %arg27[%c0_56, %c0_57] : memref<48x128xf32, #tpu.memory_space<vmem>>, vector<48x128xf32>
    %cst_58 = arith.constant dense<0.000000e+00> : vector<16x128xf32>
    %88 = tpu.matmul %13, %87, %cst_58 {dimension_numbers = #tpu.dot_dimension_numbers<[1], [0], [0], [1], [0, 0, 1, 1], [], []>} : vector<16x48xf32>, vector<48x128xf32>, vector<16x128xf32> -> vector<16x128xf32>
    %c1 = arith.constant 1 : index
    %89 = memref.load %arg0[%c1] : memref<2xf32, #tpu.memory_space<smem>>
    %cst_59 = arith.constant 1.000000e+00 : f32
    %90 = arith.addf %cst_59, %89 : f32
    %91 = vector.broadcast %90 : f32 to vector<16x128xf32>
    %92 = arith.mulf %91, %85 : vector<16x128xf32>
    %93 = arith.addf %92, %88 : vector<16x128xf32>
    %c0_60 = arith.constant 0 : index
    %c0_61 = arith.constant 0 : index
    %94 = vector.load %arg16[%c0_60, %c0_61] : memref<128x128xf32, #tpu.memory_space<vmem>>, vector<128x128xf32>
    %cst_62 = arith.constant dense<0.000000e+00> : vector<16x128xf32>
    %95 = tpu.matmul %93, %94, %cst_62 {dimension_numbers = #tpu.dot_dimension_numbers<[1], [0], [0], [1], [0, 0, 1, 1], [], []>} : vector<16x128xf32>, vector<128x128xf32>, vector<16x128xf32> -> vector<16x128xf32>
    %c0_63 = arith.constant 0 : index
    %c0_64 = arith.constant 0 : index
    %96 = vector.load %arg17[%c0_63, %c0_64] : memref<1x128xf32, #tpu.memory_space<vmem>>, vector<1x128xf32>
    %97 = vector.broadcast %96 : vector<1x128xf32> to vector<16x128xf32>
    %98 = arith.addf %95, %97 : vector<16x128xf32>
    %c0_65 = arith.constant 0 : index
    %c0_66 = arith.constant 0 : index
    %99 = vector.load %arg18[%c0_65, %c0_66] : memref<1x128xf32, #tpu.memory_space<vmem>>, vector<1x128xf32>
    %c0_67 = arith.constant 0 : index
    %c0_68 = arith.constant 0 : index
    %100 = vector.load %arg19[%c0_67, %c0_68] : memref<1x128xf32, #tpu.memory_space<vmem>>, vector<1x128xf32>
    %cst_69 = arith.constant dense<0.000000e+00> : vector<128xf32>
    %101 = vector.multi_reduction <add>, %98, %cst_69 [0] : vector<16x128xf32> to vector<128xf32>
    %102 = vector.shape_cast %101 : vector<128xf32> to vector<1x128xf32>
    %103 = arith.mulf %98, %98 : vector<16x128xf32>
    %cst_70 = arith.constant dense<0.000000e+00> : vector<128xf32>
    %104 = vector.multi_reduction <add>, %103, %cst_70 [0] : vector<16x128xf32> to vector<128xf32>
    %105 = vector.shape_cast %104 : vector<128xf32> to vector<1x128xf32>
    %cst_71 = arith.constant 6.250000e-02 : f32
    %106 = vector.broadcast %cst_71 : f32 to vector<1x128xf32>
    %107 = arith.mulf %102, %106 : vector<1x128xf32>
    %cst_72 = arith.constant 6.250000e-02 : f32
    %108 = vector.broadcast %cst_72 : f32 to vector<1x128xf32>
    %109 = arith.mulf %105, %108 : vector<1x128xf32>
    %110 = arith.mulf %107, %107 : vector<1x128xf32>
    %111 = arith.subf %109, %110 : vector<1x128xf32>
    %cst_73 = arith.constant 0.000000e+00 : f32
    %112 = vector.broadcast %cst_73 : f32 to vector<1x128xf32>
    %113 = arith.maximumf %111, %112 : vector<1x128xf32>
    %cst_74 = arith.constant 9.99999974E-6 : f32
    %114 = vector.broadcast %cst_74 : f32 to vector<1x128xf32>
    %115 = arith.addf %113, %114 : vector<1x128xf32>
    %116 = math.rsqrt %115 : vector<1x128xf32>
    %117 = arith.mulf %99, %116 : vector<1x128xf32>
    %118 = arith.mulf %107, %117 : vector<1x128xf32>
    %119 = arith.subf %100, %118 : vector<1x128xf32>
    %120 = vector.broadcast %117 : vector<1x128xf32> to vector<16x128xf32>
    %121 = arith.mulf %98, %120 : vector<16x128xf32>
    %122 = vector.broadcast %119 : vector<1x128xf32> to vector<16x128xf32>
    %123 = arith.addf %121, %122 : vector<16x128xf32>
    %cst_75 = arith.constant 0.000000e+00 : f32
    %124 = vector.broadcast %cst_75 : f32 to vector<16x128xf32>
    %125 = arith.maximumf %123, %124 : vector<16x128xf32>
    %c0_76 = arith.constant 0 : index
    %c0_77 = arith.constant 0 : index
    %126 = vector.load %arg20[%c0_76, %c0_77] : memref<128x128xf32, #tpu.memory_space<vmem>>, vector<128x128xf32>
    %cst_78 = arith.constant dense<0.000000e+00> : vector<16x128xf32>
    %127 = tpu.matmul %125, %126, %cst_78 {dimension_numbers = #tpu.dot_dimension_numbers<[1], [0], [0], [1], [0, 0, 1, 1], [], []>} : vector<16x128xf32>, vector<128x128xf32>, vector<16x128xf32> -> vector<16x128xf32>
    %c0_79 = arith.constant 0 : index
    %c0_80 = arith.constant 0 : index
    %128 = vector.load %arg21[%c0_79, %c0_80] : memref<1x128xf32, #tpu.memory_space<vmem>>, vector<1x128xf32>
    %129 = vector.broadcast %128 : vector<1x128xf32> to vector<16x128xf32>
    %130 = arith.addf %127, %129 : vector<16x128xf32>
    %c0_81 = arith.constant 0 : index
    %c0_82 = arith.constant 0 : index
    %131 = vector.load %arg22[%c0_81, %c0_82] : memref<1x128xf32, #tpu.memory_space<vmem>>, vector<1x128xf32>
    %c0_83 = arith.constant 0 : index
    %c0_84 = arith.constant 0 : index
    %132 = vector.load %arg23[%c0_83, %c0_84] : memref<1x128xf32, #tpu.memory_space<vmem>>, vector<1x128xf32>
    %cst_85 = arith.constant dense<0.000000e+00> : vector<128xf32>
    %133 = vector.multi_reduction <add>, %130, %cst_85 [0] : vector<16x128xf32> to vector<128xf32>
    %134 = vector.shape_cast %133 : vector<128xf32> to vector<1x128xf32>
    %135 = arith.mulf %130, %130 : vector<16x128xf32>
    %cst_86 = arith.constant dense<0.000000e+00> : vector<128xf32>
    %136 = vector.multi_reduction <add>, %135, %cst_86 [0] : vector<16x128xf32> to vector<128xf32>
    %137 = vector.shape_cast %136 : vector<128xf32> to vector<1x128xf32>
    %cst_87 = arith.constant 6.250000e-02 : f32
    %138 = vector.broadcast %cst_87 : f32 to vector<1x128xf32>
    %139 = arith.mulf %134, %138 : vector<1x128xf32>
    %cst_88 = arith.constant 6.250000e-02 : f32
    %140 = vector.broadcast %cst_88 : f32 to vector<1x128xf32>
    %141 = arith.mulf %137, %140 : vector<1x128xf32>
    %142 = arith.mulf %139, %139 : vector<1x128xf32>
    %143 = arith.subf %141, %142 : vector<1x128xf32>
    %cst_89 = arith.constant 0.000000e+00 : f32
    %144 = vector.broadcast %cst_89 : f32 to vector<1x128xf32>
    %145 = arith.maximumf %143, %144 : vector<1x128xf32>
    %cst_90 = arith.constant 9.99999974E-6 : f32
    %146 = vector.broadcast %cst_90 : f32 to vector<1x128xf32>
    %147 = arith.addf %145, %146 : vector<1x128xf32>
    %148 = math.rsqrt %147 : vector<1x128xf32>
    %149 = arith.mulf %131, %148 : vector<1x128xf32>
    %150 = arith.mulf %139, %149 : vector<1x128xf32>
    %151 = arith.subf %132, %150 : vector<1x128xf32>
    %152 = vector.broadcast %149 : vector<1x128xf32> to vector<16x128xf32>
    %153 = arith.mulf %130, %152 : vector<16x128xf32>
    %154 = vector.broadcast %151 : vector<1x128xf32> to vector<16x128xf32>
    %155 = arith.addf %153, %154 : vector<16x128xf32>
    %cst_91 = arith.constant 0.000000e+00 : f32
    %156 = vector.broadcast %cst_91 : f32 to vector<16x128xf32>
    %157 = arith.maximumf %155, %156 : vector<16x128xf32>
    %c0_92 = arith.constant 0 : index
    %c0_93 = arith.constant 0 : index
    %158 = vector.load %arg24[%c0_92, %c0_93] : memref<128x128xf32, #tpu.memory_space<vmem>>, vector<128x128xf32>
    %cst_94 = arith.constant dense<0.000000e+00> : vector<16x128xf32>
    %159 = tpu.matmul %157, %158, %cst_94 {dimension_numbers = #tpu.dot_dimension_numbers<[1], [0], [0], [1], [0, 0, 1, 1], [], []>} : vector<16x128xf32>, vector<128x128xf32>, vector<16x128xf32> -> vector<16x128xf32>
    %c0_95 = arith.constant 0 : index
    %c0_96 = arith.constant 0 : index
    %160 = vector.load %arg25[%c0_95, %c0_96] : memref<1x128xf32, #tpu.memory_space<vmem>>, vector<1x128xf32>
    %161 = vector.broadcast %160 : vector<1x128xf32> to vector<16x128xf32>
    %162 = arith.addf %159, %161 : vector<16x128xf32>
    %c0_97 = arith.constant 0 : index
    %c0_98 = arith.constant 0 : index
    %163 = vector.load %arg26[%c0_97, %c0_98] : memref<16x128xf32, #tpu.memory_space<vmem>>, vector<16x128xf32>
    tpu.vector_store %arg26[%c0_97, %c0_98], %162 {strides = array<i32>} : memref<16x128xf32, #tpu.memory_space<vmem>>, vector<16x128xf32>,
    return
  }
}

</mosaic_0001>

<llo_original>
// kernel: tpu_custom_call.1
$region0: #{tpu_custom_call.1}
  #allocation0 [shape = 'u32[]', space=smem, size = 0x4, offset = 0x4, fixed_abs, tag = 'smem constant byte address 0x4 - core index']
  #allocation1 [shape = 'u32[72,128]{1,0:T(1,128)}', space=vmem, size = 0x9000, scoped, tag = 'internal scratch']
  #allocation2 [shape = 'f32[48,128]{1,0:T(8,128)}', space=vmem, size = 0x6000, scoped, tag = 'scratch operand']
  %s0 = inlined_call_operand.hbm [shape: f32[2], index: 0, kind: input, shape index: {}]
  %s1 = inlined_call_operand.hbm [shape: f32[16,48], index: 1, kind: input, shape index: {}]
  %s2 = inlined_call_operand.hbm [shape: f32[16,128], index: 2, kind: input, shape index: {}]
  %s3 = inlined_call_operand.hbm [shape: f32[32,128], index: 3, kind: input, shape index: {}]
  %s4 = inlined_call_operand.hbm [shape: f32[128,128], index: 4, kind: input, shape index: {}]
  %s5 = inlined_call_operand.vmem [shape: f32[1,128], index: 5, kind: input, shape index: {}]
  %s6 = inlined_call_operand.hbm [shape: f32[128,128], index: 6, kind: input, shape index: {}]
  %s7 = inlined_call_operand.vmem [shape: f32[1,128], index: 7, kind: input, shape index: {}]
  %s8 = inlined_call_operand.hbm [shape: f32[128,128], index: 8, kind: input, shape index: {}]
  %s9 = inlined_call_operand.vmem [shape: f32[1,128], index: 9, kind: input, shape index: {}]
  %s10 = inlined_call_operand.vmem [shape: f32[1,128], index: 10, kind: input, shape index: {}]
  %s11 = inlined_call_operand.vmem [shape: f32[1,128], index: 11, kind: input, shape index: {}]
  %s12 = inlined_call_operand.hbm [shape: f32[128,128], index: 12, kind: input, shape index: {}]
  %s13 = inlined_call_operand.vmem [shape: f32[1,128], index: 13, kind: input, shape index: {}]
  %s14 = inlined_call_operand.vmem [shape: f32[1,128], index: 14, kind: input, shape index: {}]
  %s15 = inlined_call_operand.vmem [shape: f32[1,128], index: 15, kind: input, shape index: {}]
  %s16 = inlined_call_operand.hbm [shape: f32[128,128], index: 16, kind: input, shape index: {}]
  %s17 = inlined_call_operand.vmem [shape: f32[1,128], index: 17, kind: input, shape index: {}]
  %s18 = inlined_call_operand.vmem [shape: f32[1,128], index: 18, kind: input, shape index: {}]
  %s19 = inlined_call_operand.vmem [shape: f32[1,128], index: 19, kind: input, shape index: {}]
  %s20 = inlined_call_operand.hbm [shape: f32[128,128], index: 20, kind: input, shape index: {}]
  %s21 = inlined_call_operand.vmem [shape: f32[1,128], index: 21, kind: input, shape index: {}]
  %s22 = inlined_call_operand.vmem [shape: f32[1,128], index: 22, kind: input, shape index: {}]
  %s23 = inlined_call_operand.vmem [shape: f32[1,128], index: 23, kind: input, shape index: {}]
  %s24 = inlined_call_operand.hbm [shape: f32[128,128], index: 24, kind: input, shape index: {}]
  %s25 = inlined_call_operand.vmem [shape: f32[1,128], index: 25, kind: input, shape index: {}]
  %s26 = inlined_call_operand.hbm [shape: f32[16,128], index: 26, kind: output, shape index: {}]
  %s27 = sld [smem:[#allocation0]]
  $region158: #{tpu_custom_call.1} parent=0
    _
  %s29 = ssub.s32 1, %s27
  %s30 = scalar_select 0, %s29, %s27
  $region1: #{tpu_custom_call.1} parent=0
    #allocation3 [shape = 'u8[512]{0}', space=smem, size = 0x200, scoped, tag = 'input window, operand 0, single buffered']
    #allocation4 [shape = 's32[1]{0}', space=sflag, size = 0x4, scoped, tag = 'scoped memory for tpu_custom_call.1']
    #allocation5 [shape = 's32[1]{0}', space=sflag, size = 0x4, scoped, tag = 'scoped memory for tpu_custom_call.1']
    #allocation6 [shape = 's32[1]{0}', space=sflag, size = 0x4, scoped, tag = 'scoped memory for tpu_custom_call.1']
    #allocation7 [shape = 'u8[8192]{0}', space=vmem, size = 0x2000, scoped, tag = 'input window, operand 1, single buffered']
    #allocation8 [shape = 'u8[8192]{0}', space=vmem, size = 0x2000, scoped, tag = 'input window, operand 2, single buffered']
    #allocation9 [shape = 's32[1]{0}', space=sflag, size = 0x4, scoped, tag = 'scoped memory for tpu_custom_call.1']
    #allocation10 [shape = 'u8[16384]{0}', space=vmem, size = 0x4000, scoped, tag = 'input window, operand 3, single buffered']
    #allocation11 [shape = 'u8[65536]{0}', space=vmem, size = 0x10000, scoped, tag = 'input window, operand 4, single buffered']
    #allocation12 [shape = 's32[1]{0}', space=sflag, size = 0x4, scoped, tag = 'scoped memory for tpu_custom_call.1']
    #allocation13 [shape = 'u8[65536]{0}', space=vmem, size = 0x10000, scoped, tag = 'input window, operand 6, single buffered']
    #allocation14 [shape = 'u8[65536]{0}', space=vmem, size = 0x10000, scoped, tag = 'input window, operand 8, single buffered']
    #allocation15 [shape = 's32[1]{0}', space=sflag, size = 0x4, scoped, tag = 'scoped memory for tpu_custom_call.1']
    #allocation16 [shape = 'u8[65536]{0}', space=vmem, size = 0x10000, scoped, tag = 'input window, operand 12, single buffered']
    #allocation17 [shape = 'u8[65536]{0}', space=vmem, size = 0x10000, scoped, tag = 'input window, operand 16, single buffered']
    #allocation18 [shape = 's32[1]{0}', space=sflag, size = 0x4, scoped, tag = 'scoped memory for tpu_custom_call.1']
    #allocation19 [shape = 'u8[65536]{0}', space=vmem, size = 0x10000, scoped, tag = 'input window, operand 20, single buffered']
    #allocation20 [shape = 'u8[65536]{0}', space=vmem, size = 0x10000, scoped, tag = 'input window, operand 24, single buffered']
    #allocation21 [shape = 's32[1]{0}', space=sflag, size = 0x4, scoped, tag = 'scoped memory for tpu_custom_call.1']
    #allocation22 [shape = 'u8[8192]{0}', space=vmem, size = 0x2000, scoped, tag = 'output window, operand 0, single buffered']
    %31 = vsyncpa [#allocation6], 0
    %32 = vsyncpa [#allocation4], 0
    %33 = vsyncpa [#allocation9], 0
    %34 = vsyncpa [#allocation12], 0
    %35 = vsyncpa [#allocation15], 0
    %36 = vsyncpa [#allocation18], 0
    %37 = vsyncpa [#allocation21], 0
    %38 = vsyncpa [#allocation5], 0
    // Predicated region
    $region2: #{tpu_custom_call.1} parent=1 // pred_check
      _
    $region3: #{tpu_custom_call.1} parent=1 // pred_check_branch
      %40 = sbr.rel (0) target = $region5
    $region4: #{tpu_custom_call.1} parent=1 // pred_region
      %42 = vsyncadd [#allocation6], 0
      %s44 = sshll.u32 %s0, 4
      %s45 = int_to_ptr.hbm [resolvable:$true] %s44
      %47 = dma.hbm_to_smem %s45, 16, [#allocation3], [#allocation6]
    $region5: #{tpu_custom_call.1} parent=1 // pred_fallthru
      _
    // Predicated region
    $region6: #{tpu_custom_call.1} parent=1 // pred_check
      _
    $region7: #{tpu_custom_call.1} parent=1 // pred_check_branch
      %49 = sbr.rel (0) target = $region9
    $region8: #{tpu_custom_call.1} parent=1 // pred_region
      %51 = vsyncadd [#allocation4], 0
      %s52 = sshll.u32 %s1, 4
      %s53 = int_to_ptr.hbm [resolvable:$true] %s52
      %s54 = sshll.u32 [#allocation7], 4
      %s55 = int_to_ptr.vmem [resolvable:$true] %s54
      %60 = dma.hbm_to_vmem [thread:$0]  %s53, 256, %s55, [#allocation4], 128, 128, 8
    $region9: #{tpu_custom_call.1} parent=1 // pred_fallthru
      _
    // Predicated region
    $region10: #{tpu_custom_call.1} parent=1 // pred_check
      _
    $region11: #{tpu_custom_call.1} parent=1 // pred_check_branch
      %62 = sbr.rel (0) target = $region13
    $region12: #{tpu_custom_call.1} parent=1 // pred_region
      %64 = vsyncadd [#allocation9], 0
      %s65 = sshll.u32 %s2, 4
      %s66 = int_to_ptr.hbm [resolvable:$true] %s65
      %s67 = sshll.u32 [#allocation8], 4
      %s68 = int_to_ptr.vmem [resolvable:$true] %s67
      %73 = dma.hbm_to_vmem [thread:$0]  %s66, 256, %s68, [#allocation9], 128, 128, 8
    $region13: #{tpu_custom_call.1} parent=1 // pred_fallthru
      _
    // Predicated region
    $region14: #{tpu_custom_call.1} parent=1 // pred_check
      _
    $region15: #{tpu_custom_call.1} parent=1 // pred_check_branch
      %75 = sbr.rel (0) target = $region17
    $region16: #{tpu_custom_call.1} parent=1 // pred_region
      %77 = vsyncadd [#allocation9], 0
      %s78 = sshll.u32 %s3, 4
      %s79 = int_to_ptr.hbm [resolvable:$true] %s78
      %s80 = sshll.u32 [#allocation10], 4
      %s81 = int_to_ptr.vmem [resolvable:$true] %s80
      %86 = dma.hbm_to_vmem [thread:$0]  %s79, 512, %s81, [#allocation9], 128, 128, 8
    $region17: #{tpu_custom_call.1} parent=1 // pred_fallthru
      _
    // Predicated region
    $region18: #{tpu_custom_call.1} parent=1 // pred_check
      _
    $region19: #{tpu_custom_call.1} parent=1 // pred_check_branch
      %88 = sbr.rel (0) target = $region21
    $region20: #{tpu_custom_call.1} parent=1 // pred_region
      %90 = vsyncadd [#allocation12], 0
      %s91 = sshll.u32 %s4, 4
      %s92 = int_to_ptr.hbm [resolvable:$true] %s91
      %s93 = sshll.u32 [#allocation11], 4
      %s94 = int_to_ptr.vmem [resolvable:$true] %s93
      %99 = dma.hbm_to_vmem [thread:$0]  %s92, 2048, %s94, [#allocation12], 128, 128, 8
    $region21: #{tpu_custom_call.1} parent=1 // pred_fallthru
      _
    // Predicated region
    $region22: #{tpu_custom_call.1} parent=1 // pred_check
      _
    $region23: #{tpu_custom_call.1} parent=1 // pred_check_branch
      %101 = sbr.rel (0) target = $region25
    $region24: #{tpu_custom_call.1} parent=1 // pred_region
      _
    $region25: #{tpu_custom_call.1} parent=1 // pred_fallthru
      _
    // Predicated region
    $region26: #{tpu_custom_call.1} parent=1 // pred_check
      _
    $region27: #{tpu_custom_call.1} parent=1 // pred_check_branch
      %103 = sbr.rel (0) target = $region29
    $region28: #{tpu_custom_call.1} parent=1 // pred_region
      %105 = vsyncadd [#allocation12], 0
      %s106 = sshll.u32 %s6, 4
      %s107 = int_to_ptr.hbm [resolvable:$true] %s106
      %s108 = sshll.u32 [#allocation13], 4
      %s109 = int_to_ptr.vmem [resolvable:$true] %s108
      %114 = dma.hbm_to_vmem [thread:$0]  %s107, 2048, %s109, [#allocation12], 128, 128, 8
    $region29: #{tpu_custom_call.1} parent=1 // pred_fallthru
      _
    // Predicated region
    $region30: #{tpu_custom_call.1} parent=1 // pred_check
      _
    $region31: #{tpu_custom_call.1} parent=1 // pred_check_branch
      %116 = sbr.rel (0) target = $region33
    $region32: #{tpu_custom_call.1} parent=1 // pred_region
      _
    $region33: #{tpu_custom_call.1} parent=1 // pred_fallthru
      _
    // Predicated region
    $region34: #{tpu_custom_call.1} parent=1 // pred_check
      _
    $region35: #{tpu_custom_call.1} parent=1 // pred_check_branch
      %118 = sbr.rel (0) target = $region37
    $region36: #{tpu_custom_call.1} parent=1 // pred_region
      %120 = vsyncadd [#allocation15], 0
      %s121 = sshll.u32 %s8, 4
      %s122 = int_to_ptr.hbm [resolvable:$true] %s121
      %s123 = sshll.u32 [#allocation14], 4
      %s124 = int_to_ptr.vmem [resolvable:$true] %s123
      %129 = dma.hbm_to_vmem [thread:$0]  %s122, 2048, %s124, [#allocation15], 128, 128, 8
    $region37: #{tpu_custom_call.1} parent=1 // pred_fallthru
      _
    // Predicated region
    $region38: #{tpu_custom_call.1} parent=1 // pred_check
      _
    $region39: #{tpu_custom_call.1} parent=1 // pred_check_branch
      %131 = sbr.rel (0) target = $region41
    $region40: #{tpu_custom_call.1} parent=1 // pred_region
      _
    $region41: #{tpu_custom_call.1} parent=1 // pred_fallthru
      _
    // Predicated region
    $region42: #{tpu_custom_call.1} parent=1 // pred_check
      _
    $region43: #{tpu_custom_call.1} parent=1 // pred_check_branch
      %133 = sbr.rel (0) target = $region45
    $region44: #{tpu_custom_call.1} parent=1 // pred_region
      _
    $region45: #{tpu_custom_call.1} parent=1 // pred_fallthru
      _
    // Predicated region
    $region46: #{tpu_custom_call.1} parent=1 // pred_check
      _
    $region47: #{tpu_custom_call.1} parent=1 // pred_check_branch
      %135 = sbr.rel (0) target = $region49
    $region48: #{tpu_custom_call.1} parent=1 // pred_region
      _
    $region49: #{tpu_custom_call.1} parent=1 // pred_fallthru
      _
    // Predicated region
    $region50: #{tpu_custom_call.1} parent=1 // pred_check
      _
    $region51: #{tpu_custom_call.1} parent=1 // pred_check_branch
      %137 = sbr.rel (0) target = $region53
    $region52: #{tpu_custom_call.1} parent=1 // pred_region
      %139 = vsyncadd [#allocation15], 0
      %s140 = sshll.u32 %s12, 4
      %s141 = int_to_ptr.hbm [resolvable:$true] %s140
      %s142 = sshll.u32 [#allocation16], 4
      %s143 = int_to_ptr.vmem [resolvable:$true] %s142
      %148 = dma.hbm_to_vmem [thread:$0]  %s141, 2048, %s143, [#allocation15], 128, 128, 8
    $region53: #{tpu_custom_call.1} parent=1 // pred_fallthru
      _
    // Predicated region
    $region54: #{tpu_custom_call.1} parent=1 // pred_check
      _
    $region55: #{tpu_custom_call.1} parent=1 // pred_check_branch
      %150 = sbr.rel (0) target = $region57
    $region56: #{tpu_custom_call.1} parent=1 // pred_region
      _
    $region57: #{tpu_custom_call.1} parent=1 // pred_fallthru
      _
    // Predicated region
    $region58: #{tpu_custom_call.1} parent=1 // pred_check
      _
    $region59: #{tpu_custom_call.1} parent=1 // pred_check_branch
      %152 = sbr.rel (0) target = $region61
    $region60: #{tpu_custom_call.1} parent=1 // pred_region
      _
    $region61: #{tpu_custom_call.1} parent=1 // pred_fallthru
      _
    // Predicated region
    $region62: #{tpu_custom_call.1} parent=1 // pred_check
      _
    $region63: #{tpu_custom_call.1} parent=1 // pred_check_branch
      %154 = sbr.rel (0) target = $region65
    $region64: #{tpu_custom_call.1} parent=1 // pred_region
      _
    $region65: #{tpu_custom_call.1} parent=1 // pred_fallthru
      _
    // Predicated region
    $region66: #{tpu_custom_call.1} parent=1 // pred_check
      _
    $region67: #{tpu_custom_call.1} parent=1 // pred_check_branch
      %156 = sbr.rel (0) target = $region69
    $region68: #{tpu_custom_call.1} parent=1 // pred_region
      %158 = vsyncadd [#allocation18], 0
      %s159 = sshll.u32 %s16, 4
      %s160 = int_to_ptr.hbm [resolvable:$true] %s159
      %s161 = sshll.u32 [#allocation17], 4
      %s162 = int_to_ptr.vmem [resolvable:$true] %s161
      %167 = dma.hbm_to_vmem [thread:$0]  %s160, 2048, %s162, [#allocation18], 128, 128, 8
    $region69: #{tpu_custom_call.1} parent=1 // pred_fallthru
      _
    // Predicated region
    $region70: #{tpu_custom_call.1} parent=1 // pred_check
      _
    $region71: #{tpu_custom_call.1} parent=1 // pred_check_branch
      %169 = sbr.rel (0) target = $region73
    $region72: #{tpu_custom_call.1} parent=1 // pred_region
      _
    $region73: #{tpu_custom_call.1} parent=1 // pred_fallthru
      _
    // Predicated region
    $region74: #{tpu_custom_call.1} parent=1 // pred_check
      _
    $region75: #{tpu_custom_call.1} parent=1 // pred_check_branch
      %171 = sbr.rel (0) target = $region77
    $region76: #{tpu_custom_call.1} parent=1 // pred_region
      _
    $region77: #{tpu_custom_call.1} parent=1 // pred_fallthru
      _
    // Predicated region
    $region78: #{tpu_custom_call.1} parent=1 // pred_check
      _
    $region79: #{tpu_custom_call.1} parent=1 // pred_check_branch
      %173 = sbr.rel (0) target = $region81
    $region80: #{tpu_custom_call.1} parent=1 // pred_region
      _
    $region81: #{tpu_custom_call.1} parent=1 // pred_fallthru
      _
    // Predicated region
    $region82: #{tpu_custom_call.1} parent=1 // pred_check
      _
    $region83: #{tpu_custom_call.1} parent=1 // pred_check_branch
      %175 = sbr.rel (0) target = $region85
    $region84: #{tpu_custom_call.1} parent=1 // pred_region
      %177 = vsyncadd [#allocation18], 0
      %s178 = sshll.u32 %s20, 4
      %s179 = int_to_ptr.hbm [resolvable:$true] %s178
      %s180 = sshll.u32 [#allocation19], 4
      %s181 = int_to_ptr.vmem [resolvable:$true] %s180
      %186 = dma.hbm_to_vmem [thread:$0]  %s179, 2048, %s181, [#allocation18], 128, 128, 8
    $region85: #{tpu_custom_call.1} parent=1 // pred_fallthru
      _
    // Predicated region
    $region86: #{tpu_custom_call.1} parent=1 // pred_check
      _
    $region87: #{tpu_custom_call.1} parent=1 // pred_check_branch
      %188 = sbr.rel (0) target = $region89
    $region88: #{tpu_custom_call.1} parent=1 // pred_region
      _
    $region89: #{tpu_custom_call.1} parent=1 // pred_fallthru
      _
    // Predicated region
    $region90: #{tpu_custom_call.1} parent=1 // pred_check
      _
    $region91: #{tpu_custom_call.1} parent=1 // pred_check_branch
      %190 = sbr.rel (0) target = $region93
    $region92: #{tpu_custom_call.1} parent=1 // pred_region
      _
    $region93: #{tpu_custom_call.1} parent=1 // pred_fallthru
      _
    // Predicated region
    $region94: #{tpu_custom_call.1} parent=1 // pred_check
      _
    $region95: #{tpu_custom_call.1} parent=1 // pred_check_branch
      %192 = sbr.rel (0) target = $region97
    $region96: #{tpu_custom_call.1} parent=1 // pred_region
      _
    $region97: #{tpu_custom_call.1} parent=1 // pred_fallthru
      _
    // Predicated region
    $region98: #{tpu_custom_call.1} parent=1 // pred_check
      _
    $region99: #{tpu_custom_call.1} parent=1 // pred_check_branch
      %194 = sbr.rel (0) target = $region101
    $region100: #{tpu_custom_call.1} parent=1 // pred_region
      %196 = vsyncadd [#allocation21], 0
      %s197 = sshll.u32 %s24, 4
      %s198 = int_to_ptr.hbm [resolvable:$true] %s197
      %s199 = sshll.u32 [#allocation20], 4
      %s200 = int_to_ptr.vmem [resolvable:$true] %s199
      %205 = dma.hbm_to_vmem [thread:$0]  %s198, 2048, %s200, [#allocation21], 128, 128, 8
    $region101: #{tpu_custom_call.1} parent=1 // pred_fallthru
      _
    // Predicated region
    $region102: #{tpu_custom_call.1} parent=1 // pred_check
      _
    $region103: #{tpu_custom_call.1} parent=1 // pred_check_branch
      %207 = sbr.rel (0) target = $region105
    $region104: #{tpu_custom_call.1} parent=1 // pred_region
      _
    $region105: #{tpu_custom_call.1} parent=1 // pred_fallthru
      _
    // Predicated region
    $region106: #{tpu_custom_call.1} parent=1 // pred_check
      _
    $region107: #{tpu_custom_call.1} parent=1 // pred_check_branch
      %209 = sbr.rel (0) target = $region109
    $region108: #{tpu_custom_call.1} parent=1 // pred_region
      %211 = dma.done [#allocation6], 16
    $region109: #{tpu_custom_call.1} parent=1 // pred_fallthru
      _
    // Predicated region
    $region110: #{tpu_custom_call.1} parent=1 // pred_check
      _
    $region111: #{tpu_custom_call.1} parent=1 // pred_check_branch
      %213 = sbr.rel (0) target = $region113
    $region112: #{tpu_custom_call.1} parent=1 // pred_region
      %215 = dma.done [#allocation4], 256
    $region113: #{tpu_custom_call.1} parent=1 // pred_fallthru
      _
    // Predicated region
    $region114: #{tpu_custom_call.1} parent=1 // pred_check
      _
    $region115: #{tpu_custom_call.1} parent=1 // pred_check_branch
      %217 = sbr.rel (0) target = $region117
    $region116: #{tpu_custom_call.1} parent=1 // pred_region
      %219 = dma.done [#allocation9], 256
    $region117: #{tpu_custom_call.1} parent=1 // pred_fallthru
      _
    // Predicated region
    $region118: #{tpu_custom_call.1} parent=1 // pred_check
      _
    $region119: #{tpu_custom_call.1} parent=1 // pred_check_branch
      %221 = sbr.rel (0) target = $region121
    $region120: #{tpu_custom_call.1} parent=1 // pred_region
      %223 = dma.done [#allocation9], 512
    $region121: #{tpu_custom_call.1} parent=1 // pred_fallthru
      _
    // Predicated region
    $region122: #{tpu_custom_call.1} parent=1 // pred_check
      _
    $region123: #{tpu_custom_call.1} parent=1 // pred_check_branch
      %225 = sbr.rel (0) target = $region125
    $region124: #{tpu_custom_call.1} parent=1 // pred_region
      %227 = dma.done [#allocation12], 2048
    $region125: #{tpu_custom_call.1} parent=1 // pred_fallthru
      _
    // Predicated region
    $region126: #{tpu_custom_call.1} parent=1 // pred_check
      _
    $region127: #{tpu_custom_call.1} parent=1 // pred_check_branch
      %229 = sbr.rel (0) target = $region129
    $region128: #{tpu_custom_call.1} parent=1 // pred_region
      %231 = dma.done [#allocation12], 2048
    $region129: #{tpu_custom_call.1} parent=1 // pred_fallthru
      _
    // Predicated region
    $region130: #{tpu_custom_call.1} parent=1 // pred_check
      _
    $region131: #{tpu_custom_call.1} parent=1 // pred_check_branch
      %233 = sbr.rel (0) target = $region133
    $region132: #{tpu_custom_call.1} parent=1 // pred_region
      %235 = dma.done [#allocation15], 2048
    $region133: #{tpu_custom_call.1} parent=1 // pred_fallthru
      _
    // Predicated region
    $region134: #{tpu_custom_call.1} parent=1 // pred_check
      _
    $region135: #{tpu_custom_call.1} parent=1 // pred_check_branch
      %237 = sbr.rel (0) target = $region137
    $region136: #{tpu_custom_call.1} parent=1 // pred_region
      %239 = dma.done [#allocation15], 2048
    $region137: #{tpu_custom_call.1} parent=1 // pred_fallthru
      _
    // Predicated region
    $region138: #{tpu_custom_call.1} parent=1 // pred_check
      _
    $region139: #{tpu_custom_call.1} parent=1 // pred_check_branch
      %241 = sbr.rel (0) target = $region141
    $region140: #{tpu_custom_call.1} parent=1 // pred_region
      %243 = dma.done [#allocation18], 2048
    $region141: #{tpu_custom_call.1} parent=1 // pred_fallthru
      _
    // Predicated region
    $region142: #{tpu_custom_call.1} parent=1 // pred_check
      _
    $region143: #{tpu_custom_call.1} parent=1 // pred_check_branch
      %245 = sbr.rel (0) target = $region145
    $region144: #{tpu_custom_call.1} parent=1 // pred_region
      %247 = dma.done [#allocation18], 2048
    $region145: #{tpu_custom_call.1} parent=1 // pred_fallthru
      _
    // Predicated region
    $region146: #{tpu_custom_call.1} parent=1 // pred_check
      _
    $region147: #{tpu_custom_call.1} parent=1 // pred_check_branch
      %249 = sbr.rel (0) target = $region149
    $region148: #{tpu_custom_call.1} parent=1 // pred_region
      %251 = dma.done [#allocation21], 2048
    $region149: #{tpu_custom_call.1} parent=1 // pred_fallthru
      _
    %252 = sfence
    %v253 = vld [vmem:[#allocation8] sm:$0xff]
    %v254 = vld [vmem:[#allocation8 + $0x8] sm:$0xff]
    %v255 = vld [vmem:[#allocation11] sm:$0xff]
    %v256 = vld [vmem:[#allocation11 + $0x8] sm:$0xff]
    %v257 = vld [vmem:[#allocation11 + $0x10] sm:$0xff]
    %v258 = vld [vmem:[#allocation11 + $0x18] sm:$0xff]
    %v259 = vld [vmem:[#allocation11 + $0x20] sm:$0xff]
    %v260 = vld [vmem:[#allocation11 + $0x28] sm:$0xff]
    %v261 = vld [vmem:[#allocation11 + $0x30] sm:$0xff]
    %v262 = vld [vmem:[#allocation11 + $0x38] sm:$0xff]
    %v263 = vld [vmem:[#allocation11 + $0x40] sm:$0xff]
    %v264 = vld [vmem:[#allocation11 + $0x48] sm:$0xff]
    %v265 = vld [vmem:[#allocation11 + $0x50] sm:$0xff]
    %v266 = vld [vmem:[#allocation11 + $0x58] sm:$0xff]
    %v267 = vld [vmem:[#allocation11 + $0x60] sm:$0xff]
    %v268 = vld [vmem:[#allocation11 + $0x68] sm:$0xff]
    %v269 = vld [vmem:[#allocation11 + $0x70] sm:$0xff]
    %v270 = vld [vmem:[#allocation11 + $0x78] sm:$0xff]
    %v271 = vld [vmem:[%s5] sm:$0x1]
    %v273 = vperm.slane %v271, 0
    %275 = vmatpush.msra.mxu0 %v270
    %276 = vmatpush.msra.mxu0 %v269
    %277 = vmatpush.msra.mxu0 %v268
    %278 = vmatpush.msra.mxu0 %v267
    %279 = vmatpush.msra.mxu0 %v266
    %280 = vmatpush.msra.mxu0 %v265
    %281 = vmatpush.msra.mxu0 %v264
    %282 = vmatpush.msra.mxu0 %v263
    %283 = vmatpush.msra.mxu0 %v262
    %284 = vmatpush.msra.mxu0 %v261
    %285 = vmatpush.msra.mxu0 %v260
    %286 = vmatpush.msra.mxu0 %v259
    %287 = vmatpush.msra.mxu0 %v258
    %288 = vmatpush.msra.mxu0 %v257
    %289 = vmatpush.msra.mxu0 %v256
    %290 = vmatpush.msra.mxu0 %v255
    %291 = vmatmul.f32.gmra.mxu0 %v253
    %v292 = vpop.f32.mrf.mxu0
    %v293 = vadd.f32 %v273, %v292
    %294 = vmatmul.f32.gmra.mxu0 %v254
    %v295 = vpop.f32.mrf.mxu0
    %v296 = vadd.f32 %v273, %v295
    %297 = vdwg.mxu0
    %v298 = vld [vmem:[#allocation10] sm:$0xff]
    %v299 = vld [vmem:[#allocation10 + $0x8] sm:$0xff]
    %v300 = vld [vmem:[#allocation10 + $0x10] sm:$0xff]
    %v301 = vld [vmem:[#allocation10 + $0x18] sm:$0xff]
    %v302 = vld [vmem:[#allocation13] sm:$0xff]
    %v303 = vld [vmem:[#allocation13 + $0x8] sm:$0xff]
    %v304 = vld [vmem:[#allocation13 + $0x10] sm:$0xff]
    %v305 = vld [vmem:[#allocation13 + $0x18] sm:$0xff]
    %v306 = vld [vmem:[#allocation13 + $0x20] sm:$0xff]
    %v307 = vld [vmem:[#allocation13 + $0x28] sm:$0xff]
    %v308 = vld [vmem:[#allocation13 + $0x30] sm:$0xff]
    %v309 = vld [vmem:[#allocation13 + $0x38] sm:$0xff]
    %v310 = vld [vmem:[#allocation13 + $0x40] sm:$0xff]
    %v311 = vld [vmem:[#allocation13 + $0x48] sm:$0xff]
    %v312 = vld [vmem:[#allocation13 + $0x50] sm:$0xff]
    %v313 = vld [vmem:[#allocation13 + $0x58] sm:$0xff]
    %v314 = vld [vmem:[#allocation13 + $0x60] sm:$0xff]
    %v315 = vld [vmem:[#allocation13 + $0x68] sm:$0xff]
    %v316 = vld [vmem:[#allocation13 + $0x70] sm:$0xff]
    %v317 = vld [vmem:[#allocation13 + $0x78] sm:$0xff]
    %v318 = vld [vmem:[%s7] sm:$0x1]
    %v320 = vperm.slane %v318, 0
    %322 = vmatpush.msra.mxu0 %v317
    %323 = vmatpush.msra.mxu0 %v316
    %324 = vmatpush.msra.mxu0 %v315
    %325 = vmatpush.msra.mxu0 %v314
    %326 = vmatpush.msra.mxu0 %v313
    %327 = vmatpush.msra.mxu0 %v312
    %328 = vmatpush.msra.mxu0 %v311
    %329 = vmatpush.msra.mxu0 %v310
    %330 = vmatpush.msra.mxu0 %v309
    %331 = vmatpush.msra.mxu0 %v308
    %332 = vmatpush.msra.mxu0 %v307
    %333 = vmatpush.msra.mxu0 %v306
    %334 = vmatpush.msra.mxu0 %v305
    %335 = vmatpush.msra.mxu0 %v304
    %336 = vmatpush.msra.mxu0 %v303
    %337 = vmatpush.msra.mxu0 %v302
    %338 = vmatmul.f32.gmra.mxu0 %v298
    %v339 = vpop.f32.mrf.mxu0
    %v340 = vadd.f32 %v320, %v339
    %341 = vmatmul.f32.gmra.mxu0 %v299
    %v342 = vpop.f32.mrf.mxu0
    %v343 = vadd.f32 %v320, %v342
    %344 = vmatmul.f32.gmra.mxu0 %v300
    %v345 = vpop.f32.mrf.mxu0
    %v346 = vadd.f32 %v320, %v345
    %347 = vmatmul.f32.gmra.mxu0 %v301
    %v348 = vpop.f32.mrf.mxu0
    %v349 = vadd.f32 %v320, %v348
    %350 = vdwg.mxu0
    %351 = vst [vmem:[#allocation2 + $0x10] sm:$0xff] %v340
    %352 = vst [vmem:[#allocation2 + $0x18] sm:$0xff] %v343
    %353 = vst [vmem:[#allocation2 + $0x20] sm:$0xff] %v346
    %354 = vst [vmem:[#allocation2 + $0x28] sm:$0xff] %v349
    %v355 = vld [vmem:[#allocation7] sm:$0xff]
    %v356 = vld [vmem:[#allocation7 + $0x8] sm:$0xff]
    %357 = vst [vmem:[#allocation2] sm:$0xff] %v293
    %358 = vst [vmem:[#allocation2 + $0x8] sm:$0xff] %v296
    %v359 = vld [vmem:[#allocation2] sm:$0xff]
    %v360 = vld [vmem:[#allocation2 + $0x8] sm:$0xff]
    %v361 = vld [vmem:[#allocation2 + $0x10] sm:$0xff]
    %v362 = vld [vmem:[#allocation2 + $0x18] sm:$0xff]
    %v363 = vld [vmem:[#allocation2 + $0x20] sm:$0xff]
    %v364 = vld [vmem:[#allocation2 + $0x28] sm:$0xff]
    %vm365 = vcmask 392192
    %v367 = vsel %vm365, %v355, 0
    %v370 = vsel %vm365, %v356, 0
    %372 = vmatpush.msra.mxu0 0.0
    %373 = vmatpush.msra.mxu0 0.0
    %374 = vmatpush.msra.mxu0 0.0
    %375 = vmatpush.msra.mxu0 0.0
    %376 = vmatpush.msra.mxu0 0.0
    %377 = vmatpush.msra.mxu0 0.0
    %378 = vmatpush.msra.mxu0 0.0
    %379 = vmatpush.msra.mxu0 0.0
    %380 = vmatpush.msra.mxu0 0.0
    %381 = vmatpush.msra.mxu0 0.0
    %382 = vmatpush.msra.mxu0 %v364
    %383 = vmatpush.msra.mxu0 %v363
    %384 = vmatpush.msra.mxu0 %v362
    %385 = vmatpush.msra.mxu0 %v361
    %386 = vmatpush.msra.mxu0 %v360
    %387 = vmatpush.msra.mxu0 %v359
    %388 = vmatmul.f32.gmra.mxu0 %v367
    %v389 = vpop.f32.mrf.mxu0
    %v390 = vadd.f32 0.0, %v389
    %391 = vmatmul.f32.gmra.mxu0 %v370
    %v392 = vpop.f32.mrf.mxu0
    %v393 = vadd.f32 0.0, %v392
    %394 = vdwg.mxu0
    %s395 = sld [smem:[#allocation3]]
    %s396 = sadd.f32 %s395, 1.0
    %v397 = vstv %s396
    %v398 = vmul.f32 %v397, %v293
    %v399 = vmul.f32 %v397, %v296
    %v400 = vadd.f32 %v398, %v390
    %v401 = vadd.f32 %v399, %v393
    %v402 = vld [vmem:[#allocation14] sm:$0xff]
    %v403 = vld [vmem:[#allocation14 + $0x8] sm:$0xff]
    %v404 = vld [vmem:[#allocation14 + $0x10] sm:$0xff]
    %v405 = vld [vmem:[#allocation14 + $0x18] sm:$0xff]
    %v406 = vld [vmem:[#allocation14 + $0x20] sm:$0xff]
    %v407 = vld [vmem:[#allocation14 + $0x28] sm:$0xff]
    %v408 = vld [vmem:[#allocation14 + $0x30] sm:$0xff]
    %v409 = vld [vmem:[#allocation14 + $0x38] sm:$0xff]
    %v410 = vld [vmem:[#allocation14 + $0x40] sm:$0xff]
    %v411 = vld [vmem:[#allocation14 + $0x48] sm:$0xff]
    %v412 = vld [vmem:[#allocation14 + $0x50] sm:$0xff]
    %v413 = vld [vmem:[#allocation14 + $0x58] sm:$0xff]
    %v414 = vld [vmem:[#allocation14 + $0x60] sm:$0xff]
    %v415 = vld [vmem:[#allocation14 + $0x68] sm:$0xff]
    %v416 = vld [vmem:[#allocation14 + $0x70] sm:$0xff]
    %v417 = vld [vmem:[#allocation14 + $0x78] sm:$0xff]
    %v418 = vld [vmem:[%s9] sm:$0x1]
    %v420 = vperm.slane %v418, 0
    %422 = vmatpush.msra.mxu0 %v417
    %423 = vmatpush.msra.mxu0 %v416
    %424 = vmatpush.msra.mxu0 %v415
    %425 = vmatpush.msra.mxu0 %v414
    %426 = vmatpush.msra.mxu0 %v413
    %427 = vmatpush.msra.mxu0 %v412
    %428 = vmatpush.msra.mxu0 %v411
    %429 = vmatpush.msra.mxu0 %v410
    %430 = vmatpush.msra.mxu0 %v409
    %431 = vmatpush.msra.mxu0 %v408
    %432 = vmatpush.msra.mxu0 %v407
    %433 = vmatpush.msra.mxu0 %v406
    %434 = vmatpush.msra.mxu0 %v405
    %435 = vmatpush.msra.mxu0 %v404
    %436 = vmatpush.msra.mxu0 %v403
    %437 = vmatpush.msra.mxu0 %v402
    %438 = vmatmul.f32.gmra.mxu0 %v400
    %v439 = vpop.f32.mrf.mxu0
    %v440 = vadd.f32 %v420, %v439
    %441 = vmatmul.f32.gmra.mxu0 %v401
    %v442 = vpop.f32.mrf.mxu0
    %v443 = vadd.f32 %v420, %v442
    %444 = vdwg.mxu0
    %v445 = vld [vmem:[%s10] sm:$0x1]
    %v446 = vld [vmem:[%s11] sm:$0x1]
    %v447 = vadd.f32 %v440, %v443
    %v448 = vrot.slane %v447, 4
    %v449 = vadd.f32 %v447, %v448
    %v450 = vrot.slane %v449, 2
    %v451 = vadd.f32 %v449, %v450
    %v452 = vrot.slane %v451, 1
    %v453 = vadd.f32 %v451, %v452
    %v454 = vmul.f32 %v440, %v440
    %v455 = vmul.f32 %v443, %v443
    %v456 = vadd.f32 %v454, %v455
    %v457 = vrot.slane %v456, 4
    %v458 = vadd.f32 %v456, %v457
    %v459 = vrot.slane %v458, 2
    %v460 = vadd.f32 %v458, %v459
    %v461 = vrot.slane %v460, 1
    %v462 = vadd.f32 %v460, %v461
    %v463 = vmul.f32 %v453, 0.0625
    %v464 = vmul.f32 %v462, 0.0625
    %v465 = vmul.f32 %v463, %v463
    %v466 = vsub.f32 %v464, %v465
    %v467 = vmax.f32 %v466, 0.0
    %v468 = vadd.f32 %v467, 1e-05
    %v469 = vrsqrt.pop %v468
    %v470 = vmul.f32 %v469, %v468
    %v471 = vmul.f32 %v470, %v469
    %v472 = vmul.f32 0.5, %v471
    %v473 = vsub.f32 1.5, %v472
    %v474 = vmul.f32 %v469, %v473
    %vm475 = vweird.f32 %v468
    %vm476 = vweird.f32 %v469
    %vm477 = vmor %vm475, %vm476
    %v478 = vsel %vm477, %v469, %v474
    %v479 = vmul.f32 %v445, %v478
    %v480 = vmul.f32 %v463, %v479
    %v481 = vsub.f32 %v446, %v480
    %v483 = vperm.slane %v479, 0
    %v485 = vmul.f32 %v440, %v483
    %v486 = vmul.f32 %v443, %v483
    %v488 = vperm.slane %v481, 0
    %v490 = vadd.f32 %v485, %v488
    %v491 = vadd.f32 %v486, %v488
    %v492 = vmax.f32 %v490, 0.0
    %v493 = vmax.f32 %v491, 0.0
    %v494 = vld [vmem:[#allocation16] sm:$0xff]
    %v495 = vld [vmem:[#allocation16 + $0x8] sm:$0xff]
    %v496 = vld [vmem:[#allocation16 + $0x10] sm:$0xff]
    %v497 = vld [vmem:[#allocation16 + $0x18] sm:$0xff]
    %v498 = vld [vmem:[#allocation16 + $0x20] sm:$0xff]
    %v499 = vld [vmem:[#allocation16 + $0x28] sm:$0xff]
    %v500 = vld [vmem:[#allocation16 + $0x30] sm:$0xff]
    %v501 = vld [vmem:[#allocation16 + $0x38] sm:$0xff]
    %v502 = vld [vmem:[#allocation16 + $0x40] sm:$0xff]
    %v503 = vld [vmem:[#allocation16 + $0x48] sm:$0xff]
    %v504 = vld [vmem:[#allocation16 + $0x50] sm:$0xff]
    %v505 = vld [vmem:[#allocation16 + $0x58] sm:$0xff]
    %v506 = vld [vmem:[#allocation16 + $0x60] sm:$0xff]
    %v507 = vld [vmem:[#allocation16 + $0x68] sm:$0xff]
    %v508 = vld [vmem:[#allocation16 + $0x70] sm:$0xff]
    %v509 = vld [vmem:[#allocation16 + $0x78] sm:$0xff]
    %v510 = vld [vmem:[%s13] sm:$0x1]
    %v512 = vperm.slane %v510, 0
    %514 = vmatpush.msra.mxu0 %v509
    %515 = vmatpush.msra.mxu0 %v508
    %516 = vmatpush.msra.mxu0 %v507
    %517 = vmatpush.msra.mxu0 %v506
    %518 = vmatpush.msra.mxu0 %v505
    %519 = vmatpush.msra.mxu0 %v504
    %520 = vmatpush.msra.mxu0 %v503
    %521 = vmatpush.msra.mxu0 %v502
    %522 = vmatpush.msra.mxu0 %v501
    %523 = vmatpush.msra.mxu0 %v500
    %524 = vmatpush.msra.mxu0 %v499
    %525 = vmatpush.msra.mxu0 %v498
    %526 = vmatpush.msra.mxu0 %v497
    %527 = vmatpush.msra.mxu0 %v496
    %528 = vmatpush.msra.mxu0 %v495
    %529 = vmatpush.msra.mxu0 %v494
    %530 = vmatmul.f32.gmra.mxu0 %v492
    %v531 = vpop.f32.mrf.mxu0
    %v532 = vadd.f32 %v512, %v531
    %533 = vmatmul.f32.gmra.mxu0 %v493
    %v534 = vpop.f32.mrf.mxu0
    %v535 = vadd.f32 %v512, %v534
    %536 = vdwg.mxu0
    %v537 = vld [vmem:[%s14] sm:$0x1]
    %v538 = vld [vmem:[%s15] sm:$0x1]
    %v539 = vadd.f32 %v532, %v535
    %v540 = vrot.slane %v539, 4
    %v541 = vadd.f32 %v539, %v540
    %v542 = vrot.slane %v541, 2
    %v543 = vadd.f32 %v541, %v542
    %v544 = vrot.slane %v543, 1
    %v545 = vadd.f32 %v543, %v544
    %v546 = vmul.f32 %v532, %v532
    %v547 = vmul.f32 %v535, %v535
    %v548 = vadd.f32 %v546, %v547
    %v549 = vrot.slane %v548, 4
    %v550 = vadd.f32 %v548, %v549
    %v551 = vrot.slane %v550, 2
    %v552 = vadd.f32 %v550, %v551
    %v553 = vrot.slane %v552, 1
    %v554 = vadd.f32 %v552, %v553
    %v555 = vmul.f32 %v545, 0.0625
    %v556 = vmul.f32 %v554, 0.0625
    %v557 = vmul.f32 %v555, %v555
    %v558 = vsub.f32 %v556, %v557
    %v559 = vmax.f32 %v558, 0.0
    %v560 = vadd.f32 %v559, 1e-05
    %v561 = vrsqrt.pop %v560
    %v562 = vmul.f32 %v561, %v560
    %v563 = vmul.f32 %v562, %v561
    %v564 = vmul.f32 0.5, %v563
    %v565 = vsub.f32 1.5, %v564
    %v566 = vmul.f32 %v561, %v565
    %vm567 = vweird.f32 %v560
    %vm568 = vweird.f32 %v561
    %vm569 = vmor %vm567, %vm568
    %v570 = vsel %vm569, %v561, %v566
    %v571 = vmul.f32 %v537, %v570
    %v572 = vmul.f32 %v555, %v571
    %v573 = vsub.f32 %v538, %v572
    %v575 = vperm.slane %v571, 0
    %v577 = vmul.f32 %v532, %v575
    %v578 = vmul.f32 %v535, %v575
    %v580 = vperm.slane %v573, 0
    %v582 = vadd.f32 %v577, %v580
    %v583 = vadd.f32 %v578, %v580
    %v584 = vmax.f32 %v582, 0.0
    %v585 = vmax.f32 %v583, 0.0
    %586 = vst [vmem:[#allocation2] sm:$0xff] %v584
    %587 = vst [vmem:[#allocation2 + $0x8] sm:$0xff] %v585
    %v588 = vld [vmem:[#allocation2] sm:$0xff]
    %v589 = vld [vmem:[#allocation2 + $0x8] sm:$0xff]
    %v590 = vld [vmem:[#allocation2 + $0x10] sm:$0xff]
    %v591 = vld [vmem:[#allocation2 + $0x18] sm:$0xff]
    %v592 = vld [vmem:[#allocation2 + $0x20] sm:$0xff]
    %v593 = vld [vmem:[#allocation2 + $0x28] sm:$0xff]
    %594 = vmatpush.msra.mxu0 0.0
    %595 = vmatpush.msra.mxu0 0.0
    %596 = vmatpush.msra.mxu0 0.0
    %597 = vmatpush.msra.mxu0 0.0
    %598 = vmatpush.msra.mxu0 0.0
    %599 = vmatpush.msra.mxu0 0.0
    %600 = vmatpush.msra.mxu0 0.0
    %601 = vmatpush.msra.mxu0 0.0
    %602 = vmatpush.msra.mxu0 0.0
    %603 = vmatpush.msra.mxu0 0.0
    %604 = vmatpush.msra.mxu0 %v593
    %605 = vmatpush.msra.mxu0 %v592
    %606 = vmatpush.msra.mxu0 %v591
    %607 = vmatpush.msra.mxu0 %v590
    %608 = vmatpush.msra.mxu0 %v589
    %609 = vmatpush.msra.mxu0 %v588
    %610 = vmatmul.f32.gmra.mxu0 %v367
    %v611 = vpop.f32.mrf.mxu0
    %v612 = vadd.f32 0.0, %v611
    %613 = vmatmul.f32.gmra.mxu0 %v370
    %v614 = vpop.f32.mrf.mxu0
    %v615 = vadd.f32 0.0, %v614
    %616 = vdwg.mxu0
    %s617 = sld [smem:[#allocation3 + $0x1]]
    %s618 = sadd.f32 %s617, 1.0
    %v619 = vstv %s618
    %v620 = vmul.f32 %v619, %v584
    %v621 = vmul.f32 %v619, %v585
    %v622 = vadd.f32 %v620, %v612
    %v623 = vadd.f32 %v621, %v615
    %v624 = vld [vmem:[#allocation17] sm:$0xff]
    %v625 = vld [vmem:[#allocation17 + $0x8] sm:$0xff]
    %v626 = vld [vmem:[#allocation17 + $0x10] sm:$0xff]
    %v627 = vld [vmem:[#allocation17 + $0x18] sm:$0xff]
    %v628 = vld [vmem:[#allocation17 + $0x20] sm:$0xff]
    %v629 = vld [vmem:[#allocation17 + $0x28] sm:$0xff]
    %v630 = vld [vmem:[#allocation17 + $0x30] sm:$0xff]
    %v631 = vld [vmem:[#allocation17 + $0x38] sm:$0xff]
    %v632 = vld [vmem:[#allocation17 + $0x40] sm:$0xff]
    %v633 = vld [vmem:[#allocation17 + $0x48] sm:$0xff]
    %v634 = vld [vmem:[#allocation17 + $0x50] sm:$0xff]
    %v635 = vld [vmem:[#allocation17 + $0x58] sm:$0xff]
    %v636 = vld [vmem:[#allocation17 + $0x60] sm:$0xff]
    %v637 = vld [vmem:[#allocation17 + $0x68] sm:$0xff]
    %v638 = vld [vmem:[#allocation17 + $0x70] sm:$0xff]
    %v639 = vld [vmem:[#allocation17 + $0x78] sm:$0xff]
    %v640 = vld [vmem:[%s17] sm:$0x1]
    %v642 = vperm.slane %v640, 0
    %644 = vmatpush.msra.mxu0 %v639
    %645 = vmatpush.msra.mxu0 %v638
    %646 = vmatpush.msra.mxu0 %v637
    %647 = vmatpush.msra.mxu0 %v636
    %648 = vmatpush.msra.mxu0 %v635
    %649 = vmatpush.msra.mxu0 %v634
    %650 = vmatpush.msra.mxu0 %v633
    %651 = vmatpush.msra.mxu0 %v632
    %652 = vmatpush.msra.mxu0 %v631
    %653 = vmatpush.msra.mxu0 %v630
    %654 = vmatpush.msra.mxu0 %v629
    %655 = vmatpush.msra.mxu0 %v628
    %656 = vmatpush.msra.mxu0 %v627
    %657 = vmatpush.msra.mxu0 %v626
    %658 = vmatpush.msra.mxu0 %v625
    %659 = vmatpush.msra.mxu0 %v624
    %660 = vmatmul.f32.gmra.mxu0 %v622
    %v661 = vpop.f32.mrf.mxu0
    %v662 = vadd.f32 %v642, %v661
    %663 = vmatmul.f32.gmra.mxu0 %v623
    %v664 = vpop.f32.mrf.mxu0
    %v665 = vadd.f32 %v642, %v664
    %666 = vdwg.mxu0
    %v667 = vld [vmem:[%s18] sm:$0x1]
    %v668 = vld [vmem:[%s19] sm:$0x1]
    %v669 = vadd.f32 %v662, %v665
    %v670 = vrot.slane %v669, 4
    %v671 = vadd.f32 %v669, %v670
    %v672 = vrot.slane %v671, 2
    %v673 = vadd.f32 %v671, %v672
    %v674 = vrot.slane %v673, 1
    %v675 = vadd.f32 %v673, %v674
    %v676 = vmul.f32 %v662, %v662
    %v677 = vmul.f32 %v665, %v665
    %v678 = vadd.f32 %v676, %v677
    %v679 = vrot.slane %v678, 4
    %v680 = vadd.f32 %v678, %v679
    %v681 = vrot.slane %v680, 2
    %v682 = vadd.f32 %v680, %v681
    %v683 = vrot.slane %v682, 1
    %v684 = vadd.f32 %v682, %v683
    %v685 = vmul.f32 %v675, 0.0625
    %v686 = vmul.f32 %v684, 0.0625
    %v687 = vmul.f32 %v685, %v685
    %v688 = vsub.f32 %v686, %v687
    %v689 = vmax.f32 %v688, 0.0
    %v690 = vadd.f32 %v689, 1e-05
    %v691 = vrsqrt.pop %v690
    %v692 = vmul.f32 %v691, %v690
    %v693 = vmul.f32 %v692, %v691
    %v694 = vmul.f32 0.5, %v693
    %v695 = vsub.f32 1.5, %v694
    %v696 = vmul.f32 %v691, %v695
    %vm697 = vweird.f32 %v690
    %vm698 = vweird.f32 %v691
    %vm699 = vmor %vm697, %vm698
    %v700 = vsel %vm699, %v691, %v696
    %v701 = vmul.f32 %v667, %v700
    %v702 = vmul.f32 %v685, %v701
    %v703 = vsub.f32 %v668, %v702
    %v705 = vperm.slane %v701, 0
    %v707 = vmul.f32 %v662, %v705
    %v708 = vmul.f32 %v665, %v705
    %v710 = vperm.slane %v703, 0
    %v712 = vadd.f32 %v707, %v710
    %v713 = vadd.f32 %v708, %v710
    %v714 = vmax.f32 %v712, 0.0
    %v715 = vmax.f32 %v713, 0.0
    %v716 = vld [vmem:[#allocation19] sm:$0xff]
    %v717 = vld [vmem:[#allocation19 + $0x8] sm:$0xff]
    %v718 = vld [vmem:[#allocation19 + $0x10] sm:$0xff]
    %v719 = vld [vmem:[#allocation19 + $0x18] sm:$0xff]
    %v720 = vld [vmem:[#allocation19 + $0x20] sm:$0xff]
    %v721 = vld [vmem:[#allocation19 + $0x28] sm:$0xff]
    %v722 = vld [vmem:[#allocation19 + $0x30] sm:$0xff]
    %v723 = vld [vmem:[#allocation19 + $0x38] sm:$0xff]
    %v724 = vld [vmem:[#allocation19 + $0x40] sm:$0xff]
    %v725 = vld [vmem:[#allocation19 + $0x48] sm:$0xff]
    %v726 = vld [vmem:[#allocation19 + $0x50] sm:$0xff]
    %v727 = vld [vmem:[#allocation19 + $0x58] sm:$0xff]
    %v728 = vld [vmem:[#allocation19 + $0x60] sm:$0xff]
    %v729 = vld [vmem:[#allocation19 + $0x68] sm:$0xff]
    %v730 = vld [vmem:[#allocation19 + $0x70] sm:$0xff]
    %v731 = vld [vmem:[#allocation19 + $0x78] sm:$0xff]
    %v732 = vld [vmem:[%s21] sm:$0x1]
    %v734 = vperm.slane %v732, 0
    %736 = vmatpush.msra.mxu0 %v731
    %737 = vmatpush.msra.mxu0 %v730
    %738 = vmatpush.msra.mxu0 %v729
    %739 = vmatpush.msra.mxu0 %v728
    %740 = vmatpush.msra.mxu0 %v727
    %741 = vmatpush.msra.mxu0 %v726
    %742 = vmatpush.msra.mxu0 %v725
    %743 = vmatpush.msra.mxu0 %v724
    %744 = vmatpush.msra.mxu0 %v723
    %745 = vmatpush.msra.mxu0 %v722
    %746 = vmatpush.msra.mxu0 %v721
    %747 = vmatpush.msra.mxu0 %v720
    %748 = vmatpush.msra.mxu0 %v719
    %749 = vmatpush.msra.mxu0 %v718
    %750 = vmatpush.msra.mxu0 %v717
    %751 = vmatpush.msra.mxu0 %v716
    %752 = vmatmul.f32.gmra.mxu0 %v714
    %v753 = vpop.f32.mrf.mxu0
    %v754 = vadd.f32 %v734, %v753
    %755 = vmatmul.f32.gmra.mxu0 %v715
    %v756 = vpop.f32.mrf.mxu0
    %v757 = vadd.f32 %v734, %v756
    %758 = vdwg.mxu0
    %v759 = vld [vmem:[%s22] sm:$0x1]
    %v760 = vld [vmem:[%s23] sm:$0x1]
    %v761 = vadd.f32 %v754, %v757
    %v762 = vrot.slane %v761, 4
    %v763 = vadd.f32 %v761, %v762
    %v764 = vrot.slane %v763, 2
    %v765 = vadd.f32 %v763, %v764
    %v766 = vrot.slane %v765, 1
    %v767 = vadd.f32 %v765, %v766
    %v768 = vmul.f32 %v754, %v754
    %v769 = vmul.f32 %v757, %v757
    %v770 = vadd.f32 %v768, %v769
    %v771 = vrot.slane %v770, 4
    %v772 = vadd.f32 %v770, %v771
    %v773 = vrot.slane %v772, 2
    %v774 = vadd.f32 %v772, %v773
    %v775 = vrot.slane %v774, 1
    %v776 = vadd.f32 %v774, %v775
    %v777 = vmul.f32 %v767, 0.0625
    %v778 = vmul.f32 %v776, 0.0625
    %v779 = vmul.f32 %v777, %v777
    %v780 = vsub.f32 %v778, %v779
    %v781 = vmax.f32 %v780, 0.0
    %v782 = vadd.f32 %v781, 1e-05
    %v783 = vrsqrt.pop %v782
    %v784 = vmul.f32 %v783, %v782
    %v785 = vmul.f32 %v784, %v783
    %v786 = vmul.f32 0.5, %v785
    %v787 = vsub.f32 1.5, %v786
    %v788 = vmul.f32 %v783, %v787
    %vm789 = vweird.f32 %v782
    %vm790 = vweird.f32 %v783
    %vm791 = vmor %vm789, %vm790
    %v792 = vsel %vm791, %v783, %v788
    %v793 = vmul.f32 %v759, %v792
    %v794 = vmul.f32 %v777, %v793
    %v795 = vsub.f32 %v760, %v794
    %v797 = vperm.slane %v793, 0
    %v799 = vmul.f32 %v754, %v797
    %v800 = vmul.f32 %v757, %v797
    %v802 = vperm.slane %v795, 0
    %v804 = vadd.f32 %v799, %v802
    %v805 = vadd.f32 %v800, %v802
    %v806 = vmax.f32 %v804, 0.0
    %v807 = vmax.f32 %v805, 0.0
    %v808 = vld [vmem:[#allocation20] sm:$0xff]
    %v809 = vld [vmem:[#allocation20 + $0x8] sm:$0xff]
    %v810 = vld [vmem:[#allocation20 + $0x10] sm:$0xff]
    %v811 = vld [vmem:[#allocation20 + $0x18] sm:$0xff]
    %v812 = vld [vmem:[#allocation20 + $0x20] sm:$0xff]
    %v813 = vld [vmem:[#allocation20 + $0x28] sm:$0xff]
    %v814 = vld [vmem:[#allocation20 + $0x30] sm:$0xff]
    %v815 = vld [vmem:[#allocation20 + $0x38] sm:$0xff]
    %v816 = vld [vmem:[#allocation20 + $0x40] sm:$0xff]
    %v817 = vld [vmem:[#allocation20 + $0x48] sm:$0xff]
    %v818 = vld [vmem:[#allocation20 + $0x50] sm:$0xff]
    %v819 = vld [vmem:[#allocation20 + $0x58] sm:$0xff]
    %v820 = vld [vmem:[#allocation20 + $0x60] sm:$0xff]
    %v821 = vld [vmem:[#allocation20 + $0x68] sm:$0xff]
    %v822 = vld [vmem:[#allocation20 + $0x70] sm:$0xff]
    %v823 = vld [vmem:[#allocation20 + $0x78] sm:$0xff]
    %v824 = vld [vmem:[%s25] sm:$0x1]
    %v826 = vperm.slane %v824, 0
    %828 = vmatpush.msra.mxu0 %v823
    %829 = vmatpush.msra.mxu0 %v822
    %830 = vmatpush.msra.mxu0 %v821
    %831 = vmatpush.msra.mxu0 %v820
    %832 = vmatpush.msra.mxu0 %v819
    %833 = vmatpush.msra.mxu0 %v818
    %834 = vmatpush.msra.mxu0 %v817
    %835 = vmatpush.msra.mxu0 %v816
    %836 = vmatpush.msra.mxu0 %v815
    %837 = vmatpush.msra.mxu0 %v814
    %838 = vmatpush.msra.mxu0 %v813
    %839 = vmatpush.msra.mxu0 %v812
    %840 = vmatpush.msra.mxu0 %v811
    %841 = vmatpush.msra.mxu0 %v810
    %842 = vmatpush.msra.mxu0 %v809
    %843 = vmatpush.msra.mxu0 %v808
    %844 = vmatmul.f32.gmra.mxu0 %v806
    %v845 = vpop.f32.mrf.mxu0
    %v846 = vadd.f32 %v826, %v845
    %847 = vmatmul.f32.gmra.mxu0 %v807
    %v848 = vpop.f32.mrf.mxu0
    %v849 = vadd.f32 %v826, %v848
    %850 = vdwg.mxu0
    %851 = vst [vmem:[#allocation22] sm:$0xff] %v846
    %852 = vst [vmem:[#allocation22 + $0x8] sm:$0xff] %v849
    // Predicated region
    $region150: #{tpu_custom_call.1} parent=1 // pred_check
      _
    $region151: #{tpu_custom_call.1} parent=1 // pred_check_branch
      %854 = sbr.rel (0) target = $region153
    $region152: #{tpu_custom_call.1} parent=1 // pred_region
      %856 = vsyncadd [#allocation5], 0
      %s857 = sshll.u32 [#allocation22], 4
      %s858 = int_to_ptr.vmem [resolvable:$true] %s857
      %s859 = sshll.u32 %s26, 4
      %s860 = int_to_ptr.hbm [resolvable:$true] %s859
      %865 = dma.vmem_to_hbm [thread:$0]  %s858, 256, %s860, [#allocation5], 128, 128, 8
    $region153: #{tpu_custom_call.1} parent=1 // pred_fallthru
      _
    // Predicated region
    $region154: #{tpu_custom_call.1} parent=1 // pred_check
      _
    $region155: #{tpu_custom_call.1} parent=1 // pred_check_branch
      %867 = sbr.rel (0) target = $region157
    $region156: #{tpu_custom_call.1} parent=1 // pred_region
      %869 = dma.done [#allocation5], 256
    $region157: #{tpu_custom_call.1} parent=1 // pred_fallthru
      _
    %870 = vsyncpa [#allocation4], 1
    %871 = vsyncpa [#allocation9], 1
    %872 = vsyncpa [#allocation12], 1
    %873 = vsyncpa [#allocation15], 1
    %874 = vsyncpa [#allocation18], 1
    %875 = vsyncpa [#allocation21], 1
    %876 = vsyncpa [#allocation5], 1
    %877 = vsyncpa [#allocation6], 1

</llo_original>
